<compile_context>
chip_gen: v5e
topology: v5e:2x2
jax: 0.10.0
libtpu: 0.0.40
codegen_flags: <defaults>
</compile_context>

<pallas_src>
import functools

import jax
import jax.numpy as jnp
from jax.experimental import pallas as pl
from jax.experimental.pallas import tpu as pltpu

NEG_INF = float("-inf")


def _sppf_kernel(x_ref, w1_ref, b1_ref, w2_ref, b2_ref, o_ref, pad_ref,
                 *, width, pool_pad):
    """Fused SPPF forward for one batch element in (C, H*W) lane-dense layout.

    x_ref:   (1, c1, HW)                input, spatial flattened onto lanes
    w1_ref:  (c_, c1)                   cv1 1x1 weight with BN scale folded in
    b1_ref:  (c_, 1)                    cv1 folded BN bias
    w2_ref:  (4, c2, c_)                cv2 1x1 weight (BN-folded), per concat group
    b2_ref:  (c2, 1)                    cv2 folded BN bias
    o_ref:   (1, c2, HW)                output
    pad_ref: (c_, HW + 2*pool_pad*width)  -inf-haloed scratch line for the pools
    """
    c_ = w1_ref.shape[0]
    hw = x_ref.shape[2]
    base = pool_pad * width                 # start of the interior in pad_ref

    # ---- cv1: folded 1x1 conv (MXU) + bias + SiLU ---------------------------
    a = jnp.dot(w1_ref[...], x_ref[0], preferred_element_type=jnp.float32)
    a = a + b1_ref[...]
    a = a * (1.0 / (1.0 + jnp.exp(-a)))      # SiLU

    # Column-shift validity masks (hoisted: computed once, reused by all 3 pools).
    # A shift by d along the flattened axis crosses a row boundary exactly where
    # col + d is outside [0, W); those taps must contribute -inf (PyTorch pads max
    # pooling with -inf).
    col = jax.lax.broadcasted_iota(jnp.int32, (c_, hw), 1) % width
    col_masks = {}
    for d in range(-pool_pad, pool_pad + 1):
        if d == 0:
            continue
        col_masks[d] = (col < width - d) if d > 0 else (col >= -d)

    # -inf halos (left/right of the interior): row-direction out-of-range taps read
    # from here.  Only the halos need filling — the interior is always written
    # before any shifted read — and refilling them per grid step keeps this correct
    # regardless of how the batch axis is split across cores.
    halo = jnp.full((c_, base), NEG_INF, dtype=pad_ref.dtype)
    pad_ref[:, :base] = halo
    pad_ref[:, base + hw:] = halo

    def maxpool(v):
        # Horizontal (within-row) 1x5 max: shifted reads of v from the scratch line,
        # with row-boundary taps masked to -inf.
        pad_ref[:, base:base + hw] = v
        h = v
        for d in range(-pool_pad, pool_pad + 1):
            if d == 0:
                continue
            s = pad_ref[:, base + d:base + d + hw]
            h = jnp.maximum(h, jnp.where(col_masks[d], s, NEG_INF))
        # Vertical (across-row) 5x1 max; out-of-range rows hit the -inf halo.
        pad_ref[:, base:base + hw] = h
        out = h
        for d in range(-pool_pad, pool_pad + 1):
            if d == 0:
                continue
            out = jnp.maximum(
                out, pad_ref[:, base + d * width:base + d * width + hw])
        return out

    y1 = maxpool(a)
    y2 = maxpool(y1)
    y3 = maxpool(y2)

    # ---- cv2 on the (virtual) concat [a, y1, y2, y3]: 4 MXU matmuls ---------
    o = jnp.dot(w2_ref[0], a, preferred_element_type=jnp.float32)
    o = o + jnp.dot(w2_ref[1], y1, preferred_element_type=jnp.float32)
    o = o + jnp.dot(w2_ref[2], y2, preferred_element_type=jnp.float32)
    o = o + jnp.dot(w2_ref[3], y3, preferred_element_type=jnp.float32)
    o = o + b2_ref[...]
    o = o * (1.0 / (1.0 + jnp.exp(-o)))      # SiLU
    o_ref[0] = o.astype(o_ref.dtype)


def sppf_forward(x_nchw, w1f, b1, w2f, b2, k=5):
    """SPPF forward. x_nchw: (N, c1, H, W) float32; weights are BN-folded."""
    N, c1, H, W = x_nchw.shape
    c_ = w1f.shape[0]
    c2 = w2f.shape[1]
    hw = H * W
    pool_pad = k // 2

    # Free reshape (same bytes): flattened spatial goes onto the 128-lane axis.
    x2 = x_nchw.reshape(N, c1, hw)

    kernel = functools.partial(_sppf_kernel, width=W, pool_pad=pool_pad)
    out = pl.pallas_call(
        kernel,
        out_shape=jax.ShapeDtypeStruct((N, c2, hw), x_nchw.dtype),
        grid=(N,),
        in_specs=[
            pl.BlockSpec((1, c1, hw), lambda n: (n, 0, 0)),
            pl.BlockSpec((c_, c1), lambda n: (0, 0)),
            pl.BlockSpec((c_, 1), lambda n: (0, 0)),
            pl.BlockSpec((4, c2, c_), lambda n: (0, 0, 0)),
            pl.BlockSpec((c2, 1), lambda n: (0, 0)),
        ],
        out_specs=pl.BlockSpec((1, c2, hw), lambda n: (n, 0, 0)),
        scratch_shapes=[pltpu.VMEM((c_, hw + 2 * pool_pad * W), jnp.float32)],
        compiler_params=pltpu.CompilerParams(
            dimension_semantics=("parallel",),
            vmem_limit_bytes=32 * 1024 * 1024,
        ),
    )(x2, w1f, b1, w2f, b2)
    # TODO(synk): for production-sized H*W / channel counts, add a spatial-strip
    # grid axis (strip + 2*pool_pad-row halo) and a c2-block axis so per-step
    # VMEM stays under the v7x 64 MiB budget and both megacore TCs stay busy
    # even at N=1; optionally a bf16 input path on v6e/v7x.
    return out.reshape(N, c2, H, W)


def make_params(key, c1, c2, k=5):
    """Synthetic SPPF parameters (PyTorch-init-like), BatchNorm (eps=1e-3) folded."""
    c_ = c1 // 2
    eps = 1e-3  # ultralytics Conv() BatchNorm2d eps
    ks = jax.random.split(key, 10)

    # cv1 = Conv2d(c1, c_, 1, bias=False) + BN(c_)
    conv1_w = 0.1 * jax.random.normal(ks[0], (c_, c1), jnp.float32)
    g1 = 1.0 + 0.1 * jax.random.normal(ks[1], (c_,), jnp.float32)
    beta1 = 0.05 * jax.random.normal(ks[2], (c_,), jnp.float32)
    mu1 = 0.02 * jax.random.normal(ks[3], (c_,), jnp.float32)
    var1 = 1.0 + 0.1 * jax.random.uniform(ks[4], (c_,), jnp.float32)

    # cv2 = Conv2d(4*c_, c2, 1, bias=False) + BN(c2)
    conv2_w = 0.1 * jax.random.normal(ks[5], (c2, 4 * c_), jnp.float32)
    g2 = 1.0 + 0.1 * jax.random.normal(ks[6], (c2,), jnp.float32)
    beta2 = 0.05 * jax.random.normal(ks[7], (c2,), jnp.float32)
    mu2 = 0.02 * jax.random.normal(ks[8], (c2,), jnp.float32)
    var2 = 1.0 + 0.1 * jax.random.uniform(ks[9], (c2,), jnp.float32)

    s1 = g1 / jnp.sqrt(var1 + eps)
    w1f = conv1_w * s1[:, None]                          # (c_, c1)
    b1 = (beta1 - mu1 * s1).reshape(c_, 1)

    s2 = g2 / jnp.sqrt(var2 + eps)
    w2_full = conv2_w * s2[:, None]                      # (c2, 4*c_)
    w2f = jnp.stack([w2_full[:, g * c_:(g + 1) * c_] for g in range(4)], axis=0)
    b2 = (beta2 - mu2 * s2).reshape(c2, 1)
    return w1f, b1, w2f, b2


def reference_forward(x_nchw, w1f, b1, w2f, b2, k=5):
    """Pure-JAX reference: 1x1 conv + folded BN + SiLU, 3x cascaded maxpool, cat, 1x1 conv."""
    pad = k // 2

    def silu(t):
        return t * jax.nn.sigmoid(t)

    def maxpool(t):
        return jax.lax.reduce_window(
            t, -jnp.inf, jax.lax.max,
            window_dimensions=(1, 1, k, k),
            window_strides=(1, 1, 1, 1),
            padding=((0, 0), (0, 0), (pad, pad), (pad, pad)))

    a = jnp.einsum("oc,nchw->nohw", w1f, x_nchw,
                   precision=jax.lax.Precision.HIGHEST)
    a = silu(a + b1.reshape(1, -1, 1, 1))
    y1 = maxpool(a)
    y2 = maxpool(y1)
    y3 = maxpool(y2)
    cat = jnp.concatenate([a, y1, y2, y3], axis=1)
    w2_full = jnp.concatenate([w2f[g] for g in range(4)], axis=1)
    o = jnp.einsum("oc,nchw->nohw", w2_full, cat,
                   precision=jax.lax.Precision.HIGHEST)
    return silu(o + b2.reshape(1, -1, 1, 1))


if __name__ == "__main__":
    key = jax.random.PRNGKey(0)
    xkey, pkey = jax.random.split(key)

    N, c1, c2, H, W = 2, 16, 16, 16, 16        # c_ = 8, H*W = 256 (lane-dense)
    x = jax.random.normal(xkey, (N, c1, H, W), jnp.float32)  # PyTorch-style NCHW

    w1f, b1, w2f, b2 = make_params(pkey, c1, c2)

    out = sppf_forward(x, w1f, b1, w2f, b2)
    out = jax.block_until_ready(out)

    ref = reference_forward(x, w1f, b1, w2f, b2)
    assert out.shape == (N, c2, H, W)
    assert jnp.allclose(out, ref, atol=2e-3, rtol=2e-3), "mismatch vs JAX reference"

    print("KERNEL_OK")
</pallas_src>

<mosaic_0001>
module attributes {stable_mosaic.version = 11 : i64} {
  func.func @_sppf_kernel(%arg0: i32, %arg1: memref<1x16x256xf32, #tpu.memory_space<vmem>>, %arg2: memref<8x16xf32, #tpu.memory_space<vmem>>, %arg3: memref<8x1xf32, #tpu.memory_space<vmem>>, %arg4: memref<4x16x8xf32, #tpu.memory_space<vmem>>, %arg5: memref<16x1xf32, #tpu.memory_space<vmem>>, %arg6: memref<1x16x256xf32, #tpu.memory_space<vmem>>, %arg7: memref<8x320xf32, #tpu.memory_space<vmem>>) attributes {dimension_semantics = [#tpu.dimension_semantics<parallel>], iteration_bounds = array<i64: 2>, scalar_prefetch = 0 : i64, scratch_operands = 1 : i64, tpu.core_type = #tpu.core_type<tc>, window_params = [{transform_indices = @transform_0, window_bounds = array<i64: 1, 16, 256>}, {pipeline_mode = #tpu.pipeline_mode<synchronous>, transform_indices = @transform_1, window_bounds = array<i64: 8, 16>}, {pipeline_mode = #tpu.pipeline_mode<synchronous>, transform_indices = @transform_2, window_bounds = array<i64: 8, 1>}, {pipeline_mode = #tpu.pipeline_mode<synchronous>, transform_indices = @transform_3, window_bounds = array<i64: 4, 16, 8>}, {pipeline_mode = #tpu.pipeline_mode<synchronous>, transform_indices = @transform_4, window_bounds = array<i64: 16, 1>}, {transform_indices = @transform_5, window_bounds = array<i64: 1, 16, 256>}]} {
    %c0 = arith.constant 0 : index
    %c0_0 = arith.constant 0 : index
    %0 = vector.load %arg2[%c0, %c0_0] : memref<8x16xf32, #tpu.memory_space<vmem>>, vector<8x16xf32>
    %c0_1 = arith.constant 0 : index
    %c0_2 = arith.constant 0 : index
    %c0_3 = arith.constant 0 : index
    %1 = vector.load %arg1[%c0_1, %c0_2, %c0_3] : memref<1x16x256xf32, #tpu.memory_space<vmem>>, vector<1x16x256xf32>
    %2 = vector.shape_cast %1 : vector<1x16x256xf32> to vector<16x256xf32>
    %cst = arith.constant dense<0.000000e+00> : vector<8x256xf32>
    %3 = tpu.matmul %0, %2, %cst {dimension_numbers = #tpu.dot_dimension_numbers<[1], [0], [0], [1], [0, 0, 1, 1], [], []>} : vector<8x16xf32>, vector<16x256xf32>, vector<8x256xf32> -> vector<8x256xf32>
    %c0_4 = arith.constant 0 : index
    %c0_5 = arith.constant 0 : index
    %4 = vector.load %arg3[%c0_4, %c0_5] : memref<8x1xf32, #tpu.memory_space<vmem>>, vector<8x1xf32>
    %5 = vector.broadcast %4 : vector<8x1xf32> to vector<8x256xf32>
    %6 = arith.addf %3, %5 : vector<8x256xf32>
    %cst_6 = arith.constant 0.000000e+00 : f32
    %7 = vector.broadcast %cst_6 : f32 to vector<8x256xf32>
    %8 = arith.subf %7, %6 : vector<8x256xf32>
    %9 = math.exp %8 : vector<8x256xf32>
    %cst_7 = arith.constant 1.000000e+00 : f32
    %10 = vector.broadcast %cst_7 : f32 to vector<8x256xf32>
    %11 = arith.addf %10, %9 : vector<8x256xf32>
    %cst_8 = arith.constant 1.000000e+00 : f32
    %12 = vector.broadcast %cst_8 : f32 to vector<8x256xf32>
    %13 = arith.divf %12, %11 : vector<8x256xf32>
    %14 = arith.mulf %6, %13 : vector<8x256xf32>
    %15 = tpu.iota {dimensions = array<i32: 1>} : vector<8x256xi32>
    %c16_i32 = arith.constant 16 : i32
    %c0_i32 = arith.constant 0 : i32
    %16 = arith.cmpi eq, %c16_i32, %c0_i32 : i32
    %c1_i32 = arith.constant 1 : i32
    %17 = arith.select %16, %c1_i32, %c16_i32 : i32
    %18 = vector.broadcast %17 : i32 to vector<8x256xi32>
    %19 = arith.remsi %15, %18 : vector<8x256xi32>
    %c0_i32_9 = arith.constant 0 : i32
    %20 = vector.broadcast %c0_i32_9 : i32 to vector<8x256xi32>
    %21 = arith.cmpi ne, %19, %20 : vector<8x256xi32>
    %c0_i32_10 = arith.constant 0 : i32
    %22 = vector.broadcast %c0_i32_10 : i32 to vector<8x256xi32>
    %23 = arith.cmpi slt, %19, %22 : vector<8x256xi32>
    %c0_i32_11 = arith.constant 0 : i32
    %24 = arith.cmpi slt, %17, %c0_i32_11 : i32
    %25 = vector.broadcast %24 : i1 to vector<8x256xi1>
    %26 = vector.broadcast %25 : vector<8x256xi1> to vector<8x256xi1>
    %27 = arith.xori %23, %26 : vector<8x256xi1>
    %28 = arith.andi %27, %21 : vector<8x256xi1>
    %29 = vector.broadcast %17 : i32 to vector<8x256xi32>
    %30 = arith.addi %19, %29 : vector<8x256xi32>
    %31 = arith.select %28, %30, %19 : vector<8x256xi1>, vector<8x256xi32>
    %c2_i32 = arith.constant 2 : i32
    %32 = vector.broadcast %c2_i32 : i32 to vector<8x256xi32>
    %33 = arith.cmpi sge, %31, %32 : vector<8x256xi32>
    %c1_i32_12 = arith.constant 1 : i32
    %34 = vector.broadcast %c1_i32_12 : i32 to vector<8x256xi32>
    %35 = arith.cmpi sge, %31, %34 : vector<8x256xi32>
    %c15_i32 = arith.constant 15 : i32
    %36 = vector.broadcast %c15_i32 : i32 to vector<8x256xi32>
    %37 = arith.cmpi slt, %31, %36 : vector<8x256xi32>
    %c14_i32 = arith.constant 14 : i32
    %38 = vector.broadcast %c14_i32 : i32 to vector<8x256xi32>
    %39 = arith.cmpi slt, %31, %38 : vector<8x256xi32>
    %cst_13 = arith.constant 0xFF800000 : f32
    %40 = vector.broadcast %cst_13 : f32 to vector<8x32xf32>
    %c0_14 = arith.constant 0 : index
    %c0_15 = arith.constant 0 : index
    %41 = vector.load %arg7[%c0_14, %c0_15] : memref<8x320xf32, #tpu.memory_space<vmem>>, vector<8x32xf32>
    tpu.vector_store %arg7[%c0_14, %c0_15], %40 {strides = array<i32>} : memref<8x320xf32, #tpu.memory_space<vmem>>, vector<8x32xf32>,
    %c0_16 = arith.constant 0 : index
    %c288 = arith.constant 288 : index
    %42 = vector.load %arg7[%c0_16, %c288] : memref<8x320xf32, #tpu.memory_space<vmem>>, vector<8x32xf32>
    tpu.vector_store %arg7[%c0_16, %c288], %40 {strides = array<i32>} : memref<8x320xf32, #tpu.memory_space<vmem>>, vector<8x32xf32>,
    %c0_17 = arith.constant 0 : index
    %c32 = arith.constant 32 : index
    %43 = vector.load %arg7[%c0_17, %c32] : memref<8x320xf32, #tpu.memory_space<vmem>>, vector<8x256xf32>
    tpu.vector_store %arg7[%c0_17, %c32], %14 {strides = array<i32>} : memref<8x320xf32, #tpu.memory_space<vmem>>, vector<8x256xf32>,
    %c0_18 = arith.constant 0 : index
    %c30 = arith.constant 30 : index
    %44 = vector.load %arg7[%c0_18, %c30] : memref<8x320xf32, #tpu.memory_space<vmem>>, vector<8x256xf32>
    %cst_19 = arith.constant 0xFF800000 : f32
    %45 = vector.broadcast %cst_19 : f32 to vector<8x256xf32>
    %46 = arith.select %33, %44, %45 : vector<8x256xi1>, vector<8x256xf32>
    %47 = arith.maximumf %14, %46 : vector<8x256xf32>
    %c0_20 = arith.constant 0 : index
    %c31 = arith.constant 31 : index
    %48 = vector.load %arg7[%c0_20, %c31] : memref<8x320xf32, #tpu.memory_space<vmem>>, vector<8x256xf32>
    %cst_21 = arith.constant 0xFF800000 : f32
    %49 = vector.broadcast %cst_21 : f32 to vector<8x256xf32>
    %50 = arith.select %35, %48, %49 : vector<8x256xi1>, vector<8x256xf32>
    %51 = arith.maximumf %47, %50 : vector<8x256xf32>
    %c0_22 = arith.constant 0 : index
    %c33 = arith.constant 33 : index
    %52 = vector.load %arg7[%c0_22, %c33] : memref<8x320xf32, #tpu.memory_space<vmem>>, vector<8x256xf32>
    %cst_23 = arith.constant 0xFF800000 : f32
    %53 = vector.broadcast %cst_23 : f32 to vector<8x256xf32>
    %54 = arith.select %37, %52, %53 : vector<8x256xi1>, vector<8x256xf32>
    %55 = arith.maximumf %51, %54 : vector<8x256xf32>
    %c0_24 = arith.constant 0 : index
    %c34 = arith.constant 34 : index
    %56 = vector.load %arg7[%c0_24, %c34] : memref<8x320xf32, #tpu.memory_space<vmem>>, vector<8x256xf32>
    %cst_25 = arith.constant 0xFF800000 : f32
    %57 = vector.broadcast %cst_25 : f32 to vector<8x256xf32>
    %58 = arith.select %39, %56, %57 : vector<8x256xi1>, vector<8x256xf32>
    %59 = arith.maximumf %55, %58 : vector<8x256xf32>
    %c0_26 = arith.constant 0 : index
    %c32_27 = arith.constant 32 : index
    %60 = vector.load %arg7[%c0_26, %c32_27] : memref<8x320xf32, #tpu.memory_space<vmem>>, vector<8x256xf32>
    tpu.vector_store %arg7[%c0_26, %c32_27], %59 {strides = array<i32>} : memref<8x320xf32, #tpu.memory_space<vmem>>, vector<8x256xf32>,
    %c0_28 = arith.constant 0 : index
    %c0_29 = arith.constant 0 : index
    %61 = vector.load %arg7[%c0_28, %c0_29] : memref<8x320xf32, #tpu.memory_space<vmem>>, vector<8x256xf32>
    %62 = arith.maximumf %59, %61 : vector<8x256xf32>
    %c0_30 = arith.constant 0 : index
    %c16 = arith.constant 16 : index
    %63 = vector.load %arg7[%c0_30, %c16] : memref<8x320xf32, #tpu.memory_space<vmem>>, vector<8x256xf32>
    %64 = arith.maximumf %62, %63 : vector<8x256xf32>
    %c0_31 = arith.constant 0 : index
    %c48 = arith.constant 48 : index
    %65 = vector.load %arg7[%c0_31, %c48] : memref<8x320xf32, #tpu.memory_space<vmem>>, vector<8x256xf32>
    %66 = arith.maximumf %64, %65 : vector<8x256xf32>
    %c0_32 = arith.constant 0 : index
    %c64 = arith.constant 64 : index
    %67 = vector.load %arg7[%c0_32, %c64] : memref<8x320xf32, #tpu.memory_space<vmem>>, vector<8x256xf32>
    %68 = arith.maximumf %66, %67 : vector<8x256xf32>
    %c0_33 = arith.constant 0 : index
    %c32_34 = arith.constant 32 : index
    %69 = vector.load %arg7[%c0_33, %c32_34] : memref<8x320xf32, #tpu.memory_space<vmem>>, vector<8x256xf32>
    tpu.vector_store %arg7[%c0_33, %c32_34], %68 {strides = array<i32>} : memref<8x320xf32, #tpu.memory_space<vmem>>, vector<8x256xf32>,
    %c0_35 = arith.constant 0 : index
    %c30_36 = arith.constant 30 : index
    %70 = vector.load %arg7[%c0_35, %c30_36] : memref<8x320xf32, #tpu.memory_space<vmem>>, vector<8x256xf32>
    %cst_37 = arith.constant 0xFF800000 : f32
    %71 = vector.broadcast %cst_37 : f32 to vector<8x256xf32>
    %72 = arith.select %33, %70, %71 : vector<8x256xi1>, vector<8x256xf32>
    %73 = arith.maximumf %68, %72 : vector<8x256xf32>
    %c0_38 = arith.constant 0 : index
    %c31_39 = arith.constant 31 : index
    %74 = vector.load %arg7[%c0_38, %c31_39] : memref<8x320xf32, #tpu.memory_space<vmem>>, vector<8x256xf32>
    %cst_40 = arith.constant 0xFF800000 : f32
    %75 = vector.broadcast %cst_40 : f32 to vector<8x256xf32>
    %76 = arith.select %35, %74, %75 : vector<8x256xi1>, vector<8x256xf32>
    %77 = arith.maximumf %73, %76 : vector<8x256xf32>
    %c0_41 = arith.constant 0 : index
    %c33_42 = arith.constant 33 : index
    %78 = vector.load %arg7[%c0_41, %c33_42] : memref<8x320xf32, #tpu.memory_space<vmem>>, vector<8x256xf32>
    %cst_43 = arith.constant 0xFF800000 : f32
    %79 = vector.broadcast %cst_43 : f32 to vector<8x256xf32>
    %80 = arith.select %37, %78, %79 : vector<8x256xi1>, vector<8x256xf32>
    %81 = arith.maximumf %77, %80 : vector<8x256xf32>
    %c0_44 = arith.constant 0 : index
    %c34_45 = arith.constant 34 : index
    %82 = vector.load %arg7[%c0_44, %c34_45] : memref<8x320xf32, #tpu.memory_space<vmem>>, vector<8x256xf32>
    %cst_46 = arith.constant 0xFF800000 : f32
    %83 = vector.broadcast %cst_46 : f32 to vector<8x256xf32>
    %84 = arith.select %39, %82, %83 : vector<8x256xi1>, vector<8x256xf32>
    %85 = arith.maximumf %81, %84 : vector<8x256xf32>
    %c0_47 = arith.constant 0 : index
    %c32_48 = arith.constant 32 : index
    %86 = vector.load %arg7[%c0_47, %c32_48] : memref<8x320xf32, #tpu.memory_space<vmem>>, vector<8x256xf32>
    tpu.vector_store %arg7[%c0_47, %c32_48], %85 {strides = array<i32>} : memref<8x320xf32, #tpu.memory_space<vmem>>, vector<8x256xf32>,
    %c0_49 = arith.constant 0 : index
    %c0_50 = arith.constant 0 : index
    %87 = vector.load %arg7[%c0_49, %c0_50] : memref<8x320xf32, #tpu.memory_space<vmem>>, vector<8x256xf32>
    %88 = arith.maximumf %85, %87 : vector<8x256xf32>
    %c0_51 = arith.constant 0 : index
    %c16_52 = arith.constant 16 : index
    %89 = vector.load %arg7[%c0_51, %c16_52] : memref<8x320xf32, #tpu.memory_space<vmem>>, vector<8x256xf32>
    %90 = arith.maximumf %88, %89 : vector<8x256xf32>
    %c0_53 = arith.constant 0 : index
    %c48_54 = arith.constant 48 : index
    %91 = vector.load %arg7[%c0_53, %c48_54] : memref<8x320xf32, #tpu.memory_space<vmem>>, vector<8x256xf32>
    %92 = arith.maximumf %90, %91 : vector<8x256xf32>
    %c0_55 = arith.constant 0 : index
    %c64_56 = arith.constant 64 : index
    %93 = vector.load %arg7[%c0_55, %c64_56] : memref<8x320xf32, #tpu.memory_space<vmem>>, vector<8x256xf32>
    %94 = arith.maximumf %92, %93 : vector<8x256xf32>
    %c0_57 = arith.constant 0 : index
    %c32_58 = arith.constant 32 : index
    %95 = vector.load %arg7[%c0_57, %c32_58] : memref<8x320xf32, #tpu.memory_space<vmem>>, vector<8x256xf32>
    tpu.vector_store %arg7[%c0_57, %c32_58], %94 {strides = array<i32>} : memref<8x320xf32, #tpu.memory_space<vmem>>, vector<8x256xf32>,
    %c0_59 = arith.constant 0 : index
    %c30_60 = arith.constant 30 : index
    %96 = vector.load %arg7[%c0_59, %c30_60] : memref<8x320xf32, #tpu.memory_space<vmem>>, vector<8x256xf32>
    %cst_61 = arith.constant 0xFF800000 : f32
    %97 = vector.broadcast %cst_61 : f32 to vector<8x256xf32>
    %98 = arith.select %33, %96, %97 : vector<8x256xi1>, vector<8x256xf32>
    %99 = arith.maximumf %94, %98 : vector<8x256xf32>
    %c0_62 = arith.constant 0 : index
    %c31_63 = arith.constant 31 : index
    %100 = vector.load %arg7[%c0_62, %c31_63] : memref<8x320xf32, #tpu.memory_space<vmem>>, vector<8x256xf32>
    %cst_64 = arith.constant 0xFF800000 : f32
    %101 = vector.broadcast %cst_64 : f32 to vector<8x256xf32>
    %102 = arith.select %35, %100, %101 : vector<8x256xi1>, vector<8x256xf32>
    %103 = arith.maximumf %99, %102 : vector<8x256xf32>
    %c0_65 = arith.constant 0 : index
    %c33_66 = arith.constant 33 : index
    %104 = vector.load %arg7[%c0_65, %c33_66] : memref<8x320xf32, #tpu.memory_space<vmem>>, vector<8x256xf32>
    %cst_67 = arith.constant 0xFF800000 : f32
    %105 = vector.broadcast %cst_67 : f32 to vector<8x256xf32>
    %106 = arith.select %37, %104, %105 : vector<8x256xi1>, vector<8x256xf32>
    %107 = arith.maximumf %103, %106 : vector<8x256xf32>
    %c0_68 = arith.constant 0 : index
    %c34_69 = arith.constant 34 : index
    %108 = vector.load %arg7[%c0_68, %c34_69] : memref<8x320xf32, #tpu.memory_space<vmem>>, vector<8x256xf32>
    %cst_70 = arith.constant 0xFF800000 : f32
    %109 = vector.broadcast %cst_70 : f32 to vector<8x256xf32>
    %110 = arith.select %39, %108, %109 : vector<8x256xi1>, vector<8x256xf32>
    %111 = arith.maximumf %107, %110 : vector<8x256xf32>
    %c0_71 = arith.constant 0 : index
    %c32_72 = arith.constant 32 : index
    %112 = vector.load %arg7[%c0_71, %c32_72] : memref<8x320xf32, #tpu.memory_space<vmem>>, vector<8x256xf32>
    tpu.vector_store %arg7[%c0_71, %c32_72], %111 {strides = array<i32>} : memref<8x320xf32, #tpu.memory_space<vmem>>, vector<8x256xf32>,
    %c0_73 = arith.constant 0 : index
    %c0_74 = arith.constant 0 : index
    %113 = vector.load %arg7[%c0_73, %c0_74] : memref<8x320xf32, #tpu.memory_space<vmem>>, vector<8x256xf32>
    %114 = arith.maximumf %111, %113 : vector<8x256xf32>
    %c0_75 = arith.constant 0 : index
    %c16_76 = arith.constant 16 : index
    %115 = vector.load %arg7[%c0_75, %c16_76] : memref<8x320xf32, #tpu.memory_space<vmem>>, vector<8x256xf32>
    %116 = arith.maximumf %114, %115 : vector<8x256xf32>
    %c0_77 = arith.constant 0 : index
    %c48_78 = arith.constant 48 : index
    %117 = vector.load %arg7[%c0_77, %c48_78] : memref<8x320xf32, #tpu.memory_space<vmem>>, vector<8x256xf32>
    %118 = arith.maximumf %116, %117 : vector<8x256xf32>
    %c0_79 = arith.constant 0 : index
    %c64_80 = arith.constant 64 : index
    %119 = vector.load %arg7[%c0_79, %c64_80] : memref<8x320xf32, #tpu.memory_space<vmem>>, vector<8x256xf32>
    %120 = arith.maximumf %118, %119 : vector<8x256xf32>
    %c0_81 = arith.constant 0 : index
    %c0_82 = arith.constant 0 : index
    %c0_83 = arith.constant 0 : index
    %121 = vector.load %arg4[%c0_81, %c0_82, %c0_83] : memref<4x16x8xf32, #tpu.memory_space<vmem>>, vector<1x16x8xf32>
    %122 = vector.shape_cast %121 : vector<1x16x8xf32> to vector<16x8xf32>
    %cst_84 = arith.constant dense<0.000000e+00> : vector<16x256xf32>
    %123 = tpu.matmul %122, %14, %cst_84 {dimension_numbers = #tpu.dot_dimension_numbers<[1], [0], [0], [1], [0, 0, 1, 1], [], []>} : vector<16x8xf32>, vector<8x256xf32>, vector<16x256xf32> -> vector<16x256xf32>
    %c1 = arith.constant 1 : index
    %c0_85 = arith.constant 0 : index
    %c0_86 = arith.constant 0 : index
    %124 = vector.load %arg4[%c1, %c0_85, %c0_86] : memref<4x16x8xf32, #tpu.memory_space<vmem>>, vector<1x16x8xf32>
    %125 = vector.shape_cast %124 : vector<1x16x8xf32> to vector<16x8xf32>
    %cst_87 = arith.constant dense<0.000000e+00> : vector<16x256xf32>
    %126 = tpu.matmul %125, %68, %cst_87 {dimension_numbers = #tpu.dot_dimension_numbers<[1], [0], [0], [1], [0, 0, 1, 1], [], []>} : vector<16x8xf32>, vector<8x256xf32>, vector<16x256xf32> -> vector<16x256xf32>
    %127 = arith.addf %123, %126 : vector<16x256xf32>
    %c2 = arith.constant 2 : index
    %c0_88 = arith.constant 0 : index
    %c0_89 = arith.constant 0 : index
    %128 = vector.load %arg4[%c2, %c0_88, %c0_89] : memref<4x16x8xf32, #tpu.memory_space<vmem>>, vector<1x16x8xf32>
    %129 = vector.shape_cast %128 : vector<1x16x8xf32> to vector<16x8xf32>
    %cst_90 = arith.constant dense<0.000000e+00> : vector<16x256xf32>
    %130 = tpu.matmul %129, %94, %cst_90 {dimension_numbers = #tpu.dot_dimension_numbers<[1], [0], [0], [1], [0, 0, 1, 1], [], []>} : vector<16x8xf32>, vector<8x256xf32>, vector<16x256xf32> -> vector<16x256xf32>
    %131 = arith.addf %127, %130 : vector<16x256xf32>
    %c3 = arith.constant 3 : index
    %c0_91 = arith.constant 0 : index
    %c0_92 = arith.constant 0 : index
    %132 = vector.load %arg4[%c3, %c0_91, %c0_92] : memref<4x16x8xf32, #tpu.memory_space<vmem>>, vector<1x16x8xf32>
    %133 = vector.shape_cast %132 : vector<1x16x8xf32> to vector<16x8xf32>
    %cst_93 = arith.constant dense<0.000000e+00> : vector<16x256xf32>
    %134 = tpu.matmul %133, %120, %cst_93 {dimension_numbers = #tpu.dot_dimension_numbers<[1], [0], [0], [1], [0, 0, 1, 1], [], []>} : vector<16x8xf32>, vector<8x256xf32>, vector<16x256xf32> -> vector<16x256xf32>
    %135 = arith.addf %131, %134 : vector<16x256xf32>
    %c0_94 = arith.constant 0 : index
    %c0_95 = arith.constant 0 : index
    %136 = vector.load %arg5[%c0_94, %c0_95] : memref<16x1xf32, #tpu.memory_space<vmem>>, vector<16x1xf32>
    %137 = vector.broadcast %136 : vector<16x1xf32> to vector<16x256xf32>
    %138 = arith.addf %135, %137 : vector<16x256xf32>
    %cst_96 = arith.constant 0.000000e+00 : f32
    %139 = vector.broadcast %cst_96 : f32 to vector<16x256xf32>
    %140 = arith.subf %139, %138 : vector<16x256xf32>
    %141 = math.exp %140 : vector<16x256xf32>
    %cst_97 = arith.constant 1.000000e+00 : f32
    %142 = vector.broadcast %cst_97 : f32 to vector<16x256xf32>
    %143 = arith.addf %142, %141 : vector<16x256xf32>
    %cst_98 = arith.constant 1.000000e+00 : f32
    %144 = vector.broadcast %cst_98 : f32 to vector<16x256xf32>
    %145 = arith.divf %144, %143 : vector<16x256xf32>
    %146 = arith.mulf %138, %145 : vector<16x256xf32>
    %c0_99 = arith.constant 0 : index
    %c0_100 = arith.constant 0 : index
    %c0_101 = arith.constant 0 : index
    %147 = vector.load %arg6[%c0_99, %c0_100, %c0_101] : memref<1x16x256xf32, #tpu.memory_space<vmem>>, vector<1x16x256xf32>
    %148 = vector.shape_cast %147 : vector<1x16x256xf32> to vector<16x256xf32>
    %149 = vector.shape_cast %146 : vector<16x256xf32> to vector<1x16x256xf32>
    tpu.vector_store %arg6[%c0_99, %c0_100, %c0_101], %149 {strides = array<i32>} : memref<1x16x256xf32, #tpu.memory_space<vmem>>, vector<1x16x256xf32>,
    return
  }
  func.func @transform_0(%arg0: i32) -> (i32, i32, i32) {
    %c0_i32 = arith.constant 0 : i32
    %c0_i32_0 = arith.constant 0 : i32
    %c0_i32_1 = arith.constant 0 : i32
    return %arg0, %c0_i32, %c0_i32_0 : i32, i32, i32
  }
  func.func @transform_1(%arg0: i32) -> (i32, i32) {
    %c0_i32 = arith.constant 0 : i32
    %c0_i32_0 = arith.constant 0 : i32
    %c0_i32_1 = arith.constant 0 : i32
    return %c0_i32, %c0_i32_0 : i32, i32
  }
  func.func @transform_2(%arg0: i32) -> (i32, i32) {
    %c0_i32 = arith.constant 0 : i32
    %c0_i32_0 = arith.constant 0 : i32
    %c0_i32_1 = arith.constant 0 : i32
    return %c0_i32, %c0_i32_0 : i32, i32
  }
  func.func @transform_3(%arg0: i32) -> (i32, i32, i32) {
    %c0_i32 = arith.constant 0 : i32
    %c0_i32_0 = arith.constant 0 : i32
    %c0_i32_1 = arith.constant 0 : i32
    %c0_i32_2 = arith.constant 0 : i32
    return %c0_i32, %c0_i32_0, %c0_i32_1 : i32, i32, i32
  }
  func.func @transform_4(%arg0: i32) -> (i32, i32) {
    %c0_i32 = arith.constant 0 : i32
    %c0_i32_0 = arith.constant 0 : i32
    %c0_i32_1 = arith.constant 0 : i32
    return %c0_i32, %c0_i32_0 : i32, i32
  }
  func.func @transform_5(%arg0: i32) -> (i32, i32, i32) {
    %c0_i32 = arith.constant 0 : i32
    %c0_i32_0 = arith.constant 0 : i32
    %c0_i32_1 = arith.constant 0 : i32
    return %arg0, %c0_i32, %c0_i32_0 : i32, i32, i32
  }
}

</mosaic_0001>

<llo_original>
// kernel: tpu_custom_call.1
$region0: #{tpu_custom_call.1}
  #allocation0 [shape = 'u32[]', space=smem, size = 0x4, offset = 0x4, fixed_abs, tag = 'smem constant byte address 0x4 - core index']
  #allocation1 [shape = 'u32[72,128]{1,0:T(1,128)}', space=vmem, size = 0x9000, scoped, tag = 'internal scratch']
  #allocation2 [shape = 'f32[8,320]{1,0:T(8,128)}', space=vmem, size = 0x3000, scoped, tag = 'scratch operand']
  %s0 = inlined_call_operand.vmem [shape: f32[2,16,256], index: 0, kind: input, shape index: {}]
  %s1 = inlined_call_operand.vmem [shape: f32[8,16], index: 1, kind: input, shape index: {}]
  %s2 = inlined_call_operand.vmem [shape: f32[8,1], index: 2, kind: input, shape index: {}]
  %s3 = inlined_call_operand.vmem [shape: f32[4,16,8], index: 3, kind: input, shape index: {}]
  %s4 = inlined_call_operand.vmem [shape: f32[16,1], index: 4, kind: input, shape index: {}]
  %s5 = inlined_call_operand.hbm [shape: f32[2,16,256], index: 5, kind: output, shape index: {}]
  %s6 = sld [smem:[#allocation0]]
  $region53: #{tpu_custom_call.1} parent=0
    _
  %s8 = ssub.s32 1, %s6
  %s9 = scalar_select 0, %s8, %s6
  $region1: #{tpu_custom_call.1} parent=0
    #allocation3 [shape = 'u8[32768]{0}', space=vmem, size = 0x8000, scoped, tag = 'output window, operand 0']
    #allocation4 [shape = 's32[2]{0}', space=sflag, size = 0x8, scoped, tag = 'scoped memory for tpu_custom_call.1']
    %10 = vsyncpa [#allocation4], 0
    %s11 = scalar_lea.sflag [#allocation4], 1
    %12 = vsyncpa %s11, 0
    loop: start=0, step=1, limit=4
    $region2: #{tpu_custom_call.1} parent=1 // loop_pre_header
      _
    $region3: #{tpu_custom_call.1} parent=1 // loop_header
      %s14 = sphi 0, %s18
      %p15 = scmp.ge.s32.totalorder %s14, 4
      %s24 = sphi 0, %s26
      %s27 = sphi 0, %s24
      %s28 = sphi 0, %s27
      %s44 = sphi 0, %s28
      %s48 = sphi 0, %s48
      %s50 = sphi 0, %s48
      %s51 = sphi 0, %s50
      %s65 = sphi 0, %s51
      %s69 = sphi 0, %s69
      %s71 = sphi 0, %s69
      %s72 = sphi 0, %s71
      %s86 = sphi 0, %s72
      %s90 = sphi 0, %s90
      %s92 = sphi 0, %s90
      %s93 = sphi 0, %s92
      %s107 = sphi 0, %s93
      %s111 = sphi 0, %s111
      %s113 = sphi 0, %s111
      %s114 = sphi 0, %s113
      %s128 = sphi 0, %s114
      %s134 = sphi 0, %s136
      %s137 = sphi 0, %s134
      %s138 = sphi 0, %s137
      %s154 = sphi 0, %s138
    $region4: #{tpu_custom_call.1} parent=1 // loop_header_branch
      %17 = sbr.rel (%p15) target = $region8
    $region5: #{tpu_custom_call.1} parent=1 // loop_body
      %s19 = ssub.s32 %s14, 1
      %s20 = ssub.s32 %s14, 2
      %s21 = sadd.s32 %s14, 1
      %s22 = ssub.s32 %s14, %s21
      %p23 = scmp.eq.s32.totalorder %s22, 0
      %s25 = sadd.s32 %s24, 1
      %s26 = scalar_select %p23, %s24, %s25
      %p29 = pneg %p23
      %p30 = scmp.eq.s32.totalorder %s14, 1
      %p31 = por %p29, %p30
      %p32 = scmp.ne.s32.totalorder %s24, %s27
      %p33 = scmp.eq.s32.totalorder %s14, 0
      %p34 = por %p32, %p33
      %p35 = scmp.ne.s32.totalorder %s24, %s27
      %p36 = scmp.eq.s32.totalorder %s19, 1
      %p37 = por %p35, %p36
      %p38 = scmp.ne.s32.totalorder %s27, %s28
      %p39 = scmp.eq.s32.totalorder %s19, 0
      %p40 = por %p38, %p39
      %p41 = scmp.ne.s32.totalorder %s27, %s28
      %p42 = scmp.eq.s32.totalorder %s20, 1
      %p43 = por %p41, %p42
      %p45 = scmp.ne.s32.totalorder %s28, %s44
      %p46 = scmp.eq.s32.totalorder %s20, 0
      %p47 = por %p45, %p46
      %s49 = sadd.s32 %s48, 1
      %p52 = scmp.eq.s32.totalorder %s14, 1
      %p53 = scmp.ne.s32.totalorder %s48, %s50
      %p54 = scmp.eq.s32.totalorder %s14, 0
      %p55 = por %p53, %p54
      %p56 = scmp.ne.s32.totalorder %s48, %s50
      %p57 = scmp.eq.s32.totalorder %s19, 1
      %p58 = por %p56, %p57
      %p59 = scmp.ne.s32.totalorder %s50, %s51
      %p60 = scmp.eq.s32.totalorder %s19, 0
      %p61 = por %p59, %p60
      %p62 = scmp.ne.s32.totalorder %s50, %s51
      %p63 = scmp.eq.s32.totalorder %s20, 1
      %p64 = por %p62, %p63
      %p66 = scmp.ne.s32.totalorder %s51, %s65
      %p67 = scmp.eq.s32.totalorder %s20, 0
      %p68 = por %p66, %p67
      %s70 = sadd.s32 %s69, 1
      %p73 = scmp.eq.s32.totalorder %s14, 1
      %p74 = scmp.ne.s32.totalorder %s69, %s71
      %p75 = scmp.eq.s32.totalorder %s14, 0
      %p76 = por %p74, %p75
      %p77 = scmp.ne.s32.totalorder %s69, %s71
      %p78 = scmp.eq.s32.totalorder %s19, 1
      %p79 = por %p77, %p78
      %p80 = scmp.ne.s32.totalorder %s71, %s72
      %p81 = scmp.eq.s32.totalorder %s19, 0
      %p82 = por %p80, %p81
      %p83 = scmp.ne.s32.totalorder %s71, %s72
      %p84 = scmp.eq.s32.totalorder %s20, 1
      %p85 = por %p83, %p84
      %p87 = scmp.ne.s32.totalorder %s72, %s86
      %p88 = scmp.eq.s32.totalorder %s20, 0
      %p89 = por %p87, %p88
      %s91 = sadd.s32 %s90, 1
      %p94 = scmp.eq.s32.totalorder %s14, 1
      %p95 = scmp.ne.s32.totalorder %s90, %s92
      %p96 = scmp.eq.s32.totalorder %s14, 0
      %p97 = por %p95, %p96
      %p98 = scmp.ne.s32.totalorder %s90, %s92
      %p99 = scmp.eq.s32.totalorder %s19, 1
      %p100 = por %p98, %p99
      %p101 = scmp.ne.s32.totalorder %s92, %s93
      %p102 = scmp.eq.s32.totalorder %s19, 0
      %p103 = por %p101, %p102
      %p104 = scmp.ne.s32.totalorder %s92, %s93
      %p105 = scmp.eq.s32.totalorder %s20, 1
      %p106 = por %p104, %p105
      %p108 = scmp.ne.s32.totalorder %s93, %s107
      %p109 = scmp.eq.s32.totalorder %s20, 0
      %p110 = por %p108, %p109
      %s112 = sadd.s32 %s111, 1
      %p115 = scmp.eq.s32.totalorder %s14, 1
      %p116 = scmp.ne.s32.totalorder %s111, %s113
      %p117 = scmp.eq.s32.totalorder %s14, 0
      %p118 = por %p116, %p117
      %p119 = scmp.ne.s32.totalorder %s111, %s113
      %p120 = scmp.eq.s32.totalorder %s19, 1
      %p121 = por %p119, %p120
      %p122 = scmp.ne.s32.totalorder %s113, %s114
      %p123 = scmp.eq.s32.totalorder %s19, 0
      %p124 = por %p122, %p123
      %p125 = scmp.ne.s32.totalorder %s113, %s114
      %p126 = scmp.eq.s32.totalorder %s20, 1
      %p127 = por %p125, %p126
      %p129 = scmp.ne.s32.totalorder %s114, %s128
      %p130 = scmp.eq.s32.totalorder %s20, 0
      %p131 = por %p129, %p130
      %s132 = ssub.s32 %s14, %s21
      %p133 = scmp.eq.s32.totalorder %s132, 0
      %s135 = sadd.s32 %s134, 1
      %s136 = scalar_select %p133, %s134, %s135
      %p139 = pneg %p133
      %p140 = scmp.eq.s32.totalorder %s14, 1
      %p141 = por %p139, %p140
      %p142 = scmp.ne.s32.totalorder %s134, %s137
      %p143 = scmp.eq.s32.totalorder %s14, 0
      %p144 = por %p142, %p143
      %p145 = scmp.ne.s32.totalorder %s134, %s137
      %p146 = scmp.eq.s32.totalorder %s19, 1
      %p147 = por %p145, %p146
      %p148 = scmp.ne.s32.totalorder %s137, %s138
      %p149 = scmp.eq.s32.totalorder %s19, 0
      %p150 = por %p148, %p149
      %p151 = scmp.ne.s32.totalorder %s137, %s138
      %p152 = scmp.eq.s32.totalorder %s20, 1
      %p153 = por %p151, %p152
      %p155 = scmp.ne.s32.totalorder %s138, %s154
      %p156 = scmp.eq.s32.totalorder %s20, 0
      %p157 = por %p155, %p156
      %p158 = scmp.le.s32.totalorder 1, %s14
      %p159 = scmp.lt.s32.totalorder %s14, 3
      %p160 = pnand %p158, %p159
      %p161 = pneg %p160
      // Predicated region
      $region9: #{tpu_custom_call.1} parent=5 // pred_check
        _
      $region10: #{tpu_custom_call.1} parent=5 // pred_check_branch
        %163 = sbr.rel (%p160) target = $region12
      $region11: #{tpu_custom_call.1} parent=5 // pred_region
        %s164 = ssub.s32 %s14, 1
        // Predicated region
        $region13: #{tpu_custom_call.1} parent=11 // pred_check
          %p165 = pneg %p61
        $region14: #{tpu_custom_call.1} parent=11 // pred_check_branch
          %167 = sbr.rel (%p165) target = $region16
        $region15: #{tpu_custom_call.1} parent=11 // pred_region
          _
        $region16: #{tpu_custom_call.1} parent=11 // pred_fallthru
          _
        // Predicated region
        $region17: #{tpu_custom_call.1} parent=11 // pred_check
          %p168 = pneg %p82
        $region18: #{tpu_custom_call.1} parent=11 // pred_check_branch
          %170 = sbr.rel (%p168) target = $region20
        $region19: #{tpu_custom_call.1} parent=11 // pred_region
          _
        $region20: #{tpu_custom_call.1} parent=11 // pred_fallthru
          _
        // Predicated region
        $region21: #{tpu_custom_call.1} parent=11 // pred_check
          %p171 = pneg %p103
        $region22: #{tpu_custom_call.1} parent=11 // pred_check_branch
          %173 = sbr.rel (%p171) target = $region24
        $region23: #{tpu_custom_call.1} parent=11 // pred_region
          _
        $region24: #{tpu_custom_call.1} parent=11 // pred_fallthru
          _
        // Predicated region
        $region25: #{tpu_custom_call.1} parent=11 // pred_check
          %p174 = pneg %p124
        $region26: #{tpu_custom_call.1} parent=11 // pred_check_branch
          %176 = sbr.rel (%p174) target = $region28
        $region27: #{tpu_custom_call.1} parent=11 // pred_region
          _
        $region28: #{tpu_custom_call.1} parent=11 // pred_fallthru
          _
      $region12: #{tpu_custom_call.1} parent=5 // pred_fallthru
        _
      %p177 = scmp.lt.s32.totalorder %s14, 2
      // Predicated region
      $region29: #{tpu_custom_call.1} parent=5 // pred_check
        %p178 = pneg %p177
      $region30: #{tpu_custom_call.1} parent=5 // pred_check_branch
        %180 = sbr.rel (%p178) target = $region32
      $region31: #{tpu_custom_call.1} parent=5 // pred_region
        // Predicated region
        $region33: #{tpu_custom_call.1} parent=31 // pred_check
          %p181 = pneg %p34
        $region34: #{tpu_custom_call.1} parent=31 // pred_check_branch
          %183 = sbr.rel (%p181) target = $region36
        $region35: #{tpu_custom_call.1} parent=31 // pred_region
          %p184 = scmp.lt.s32.totalorder %s14, 1
          %s185 = scalar_select %p184, %s14, 1
          %s186 = smul.addr %s185, 4
          %s187 = smul.addr %s186, 8
          %s188 = scalar_lea.vmem %s0, %s187
        $region36: #{tpu_custom_call.1} parent=31 // pred_fallthru
          _
      $region32: #{tpu_custom_call.1} parent=5 // pred_fallthru
        _
      %p189 = scmp.le.s32.totalorder 1, %s14
      %p190 = scmp.lt.s32.totalorder %s14, 3
      %p191 = pnand %p189, %p190
      %p192 = pneg %p191
      // Predicated region
      $region37: #{tpu_custom_call.1} parent=5 // pred_check
        _
      $region38: #{tpu_custom_call.1} parent=5 // pred_check_branch
        %194 = sbr.rel (%p191) target = $region40
      $region39: #{tpu_custom_call.1} parent=5 // pred_region
        %s195 = ssub.s32 %s14, 1
        %p196 = scmp.lt.s32.totalorder %s19, 1
        %s197 = scalar_select %p196, %s19, 1
        %s198 = smul.addr %s197, 4
        %s199 = smul.addr %s198, 8
        %s200 = scalar_lea.vmem %s0, %s199
        %p201 = pneg %p40
        %p202 = pneg %p37
        %p203 = pneg %p61
        %p204 = pneg %p58
        %p205 = pneg %p82
        %p206 = pneg %p79
        %p207 = pneg %p103
        %p208 = pneg %p100
        %p209 = pneg %p124
        %p210 = pneg %p121
        %p211 = pneg %p150
        %p212 = pneg %p147
        %s213 = sand.u32 %s137, 1
        %s214 = scalar_lea.sflag [#allocation4], %s213
        %s215 = sand.u32 %s137, 1
        %s216 = smul.addr %s215, 32
        %s217 = scalar_lea.vmem [#allocation3], %s216
        %p218 = scmp.lt.s32.totalorder %s19, 1
        %s219 = scalar_select %p218, %s19, 1
        %s220 = smul.addr %s219, 4
        %s221 = smul.addr %s220, 8
        %s222 = scalar_lea.vmem %s0, %s221
        %v223 = vld [vmem:[%s1] sm:$0xff]
        %v224 = vld [vmem:[%s222] sm:$0xff]
        %v225 = vld [vmem:[%s222 + $0x8] sm:$0xff]
        %v226 = vld [vmem:[%s222 + $0x10] sm:$0xff]
        %v227 = vld [vmem:[%s222 + $0x18] sm:$0xff]
        %v228 = vld [vmem:[%s2] sm:$0xff]
        %230 = vset.pattern.permute.xlu0 0
        %231 = vperm.xlu0 %230, %v228
        %v232 = vpop.permute.xlu0 %231
        %vm234 = vcmask 130048
        %v236 = vsel %vm234, %v223, 0
        %238 = vmatpush.msra.mxu0 0.0
        %239 = vmatpush.msra.mxu0 0.0
        %240 = vmatpush.msra.mxu0 0.0
        %241 = vmatpush.msra.mxu0 0.0
        %242 = vmatpush.msra.mxu0 0.0
        %243 = vmatpush.msra.mxu0 0.0
        %244 = vmatpush.msra.mxu0 0.0
        %245 = vmatpush.msra.mxu0 0.0
        %246 = vmatpush.msra.mxu0 0.0
        %247 = vmatpush.msra.mxu0 0.0
        %248 = vmatpush.msra.mxu0 0.0
        %249 = vmatpush.msra.mxu0 0.0
        %250 = vmatpush.msra.mxu0 0.0
        %251 = vmatpush.msra.mxu0 0.0
        %252 = vmatpush.msra.mxu0 %v226
        %253 = vmatpush.msra.mxu0 %v224
        %254 = vmatmul.f32.gmra.mxu0 %v236
        %v255 = vpop.f32.mrf.mxu0
        %v256 = vadd.f32 %v232, %v255
        %257 = vdwg.mxu0
        %258 = vmatpush.msra.mxu0 0.0
        %259 = vmatpush.msra.mxu0 0.0
        %260 = vmatpush.msra.mxu0 0.0
        %261 = vmatpush.msra.mxu0 0.0
        %262 = vmatpush.msra.mxu0 0.0
        %263 = vmatpush.msra.mxu0 0.0
        %264 = vmatpush.msra.mxu0 0.0
        %265 = vmatpush.msra.mxu0 0.0
        %266 = vmatpush.msra.mxu0 0.0
        %267 = vmatpush.msra.mxu0 0.0
        %268 = vmatpush.msra.mxu0 0.0
        %269 = vmatpush.msra.mxu0 0.0
        %270 = vmatpush.msra.mxu0 0.0
        %271 = vmatpush.msra.mxu0 0.0
        %272 = vmatpush.msra.mxu0 %v227
        %273 = vmatpush.msra.mxu0 %v225
        %274 = vmatmul.f32.gmra.mxu0 %v236
        %v275 = vpop.f32.mrf.mxu0
        %v276 = vadd.f32 %v232, %v275
        %277 = vdwg.mxu0
        %v278 = vsub.f32 0.0, %v256
        %v279 = vsub.f32 0.0, %v276
        %v280 = vmul.f32 %v278, 1.442695
        %v281 = vpow.pop %v280
        %v282 = vmul.f32 %v279, 1.442695
        %v283 = vpow.pop %v282
        %v284 = vadd.f32 %v281, 1.0
        %v285 = vadd.f32 %v283, 1.0
        %v286 = vrcp.pop %v284
        %v287 = vmul.f32 %v284, %v286
        %v288 = vsub.f32 1.0, %v287
        %v289 = vmul.f32 %v286, %v288
        %v290 = vadd.f32 %v286, %v289
        %vm291 = vweird.f32 %v284
        %vm292 = vweird.f32 %v286
        %vm293 = vmor %vm291, %vm292
        %v294 = vsel %vm293, %v286, %v290
        %v295 = vand.u32 2147483647, %v284
        %vm296 = vcmp.eq.f32.partialorder %v295, 8.507059e+37
        %v297 = vand.u32 %v284, 2147483648
        %v298 = vor.u32 1.1754944e-38, %v297
        %v299 = vsel %vm296, %v298, %v294
        %v300 = vmul.f32 1.0, %v299
        %v301 = vrcp.pop %v285
        %v302 = vmul.f32 %v285, %v301
        %v303 = vsub.f32 1.0, %v302
        %v304 = vmul.f32 %v301, %v303
        %v305 = vadd.f32 %v301, %v304
        %vm306 = vweird.f32 %v285
        %vm307 = vweird.f32 %v301
        %vm308 = vmor %vm306, %vm307
        %v309 = vsel %vm308, %v301, %v305
        %v310 = vand.u32 2147483647, %v285
        %vm311 = vcmp.eq.f32.partialorder %v310, 8.507059e+37
        %v312 = vand.u32 %v285, 2147483648
        %v313 = vor.u32 1.1754944e-38, %v312
        %v314 = vsel %vm311, %v313, %v309
        %v315 = vmul.f32 1.0, %v314
        %v316 = vmul.f32 %v256, %v300
        %v317 = vmul.f32 %v276, %v315
        %v318 = vlaneseq
        %v319 = vand.u32 %v318, 127
        %v320 = vadd.s32 %v319, 128
        %vm321 = vcmp.lt.s32.totalorder %v319, 0
        %v322 = vsub.s32 0, %v319
        %v323 = vsel %vm321, %v322, %v319
        %v324 = vshrl.u32 %v323, 4
        %v325 = vand.u32 %v323, 15
        %v326 = vsub.s32 0, %v325
        %v327 = vsel %vm321, %v326, %v325
        %vm328 = vcmp.lt.s32.totalorder %v320, 0
        %v329 = vsub.s32 0, %v320
        %v330 = vsel %vm328, %v329, %v320
        %v331 = vshrl.u32 %v330, 4
        %v332 = vand.u32 %v330, 15
        %v333 = vsub.s32 0, %v332
        %v334 = vsel %vm328, %v333, %v332
        %vm335 = vcmp.ne.s32.totalorder %v327, 0
        %vm336 = vcmp.ne.s32.totalorder %v334, 0
        %vm337 = vcmp.lt.s32.totalorder %v327, 0
        %vm338 = vcmp.lt.s32.totalorder %v334, 0
        %vm339 = vmand %vm337, %vm335
        %vm340 = vmand %vm338, %vm336
        %v341 = vadd.s32 %v327, 16
        %v342 = vadd.s32 %v334, 16
        %v343 = vsel %vm339, %v341, %v327
        %v344 = vsel %vm340, %v342, %v334
        %vm345 = vcmp.ge.s32.totalorder %v343, 2
        %vm346 = vcmp.ge.s32.totalorder %v344, 2
        %vm347 = vcmp.ge.s32.totalorder %v343, 1
        %vm348 = vcmp.ge.s32.totalorder %v344, 1
        %vm349 = vcmp.lt.s32.totalorder %v343, 15
        %vm350 = vcmp.lt.s32.totalorder %v344, 15
        %vm351 = vcmp.lt.s32.totalorder %v343, 14
        %vm352 = vcmp.lt.s32.totalorder %v344, 14
        %vm353 = vcmask 261120
        %354 = vst.msk [vmem:[#allocation2] sm:$0xff] %vm353, -inf
        %vm355 = vcmask 523520
        %356 = vst.msk [vmem:[#allocation2 + $0x10] sm:$0xff] %vm355, -inf
        %359 = vrot.lane.b32.xlu0 %v316, 32
        %v360 = vpop.permute.xlu0 %359
        %361 = vrot.lane.b32.xlu0 %v317, 32
        %v362 = vpop.permute.xlu0 %361
        %v363 = vsel %vm353, %v360, %v362
        %vm367 = vcmask 1047808
        %368 = vst.msk [vmem:[#allocation2] sm:$0xff] %vm367, %v360
        %369 = vst [vmem:[#allocation2 + $0x8] sm:$0xff] %v363
        %370 = vst.msk [vmem:[#allocation2 + $0x10] sm:$0xff] %vm353, %v362
        %v371 = vld [vmem:[#allocation2] sm:$0xff]
        %v372 = vld [vmem:[#allocation2 + $0x8] sm:$0xff]
        %v373 = vld [vmem:[#allocation2 + $0x10] sm:$0xff]
        %377 = vrot.lane.b32.xlu0 %v371, 98
        %v378 = vpop.permute.xlu0 %377
        %379 = vrot.lane.b32.xlu0 %v372, 98
        %v380 = vpop.permute.xlu0 %379
        %381 = vrot.lane.b32.xlu0 %v373, 98
        %v382 = vpop.permute.xlu0 %381
        %vm383 = vcmask 801792
        %v384 = vsel %vm383, %v378, %v380
        %v385 = vsel %vm383, %v380, %v382
        %v388 = vsel %vm345, %v384, -inf
        %v389 = vsel %vm346, %v385, -inf
        %v390 = vmax.f32 %v316, %v388
        %v391 = vmax.f32 %v317, %v389
        %392 = vrot.lane.b32.xlu0 %v371, 97
        %v393 = vpop.permute.xlu0 %392
        %394 = vrot.lane.b32.xlu0 %v372, 97
        %v395 = vpop.permute.xlu0 %394
        %396 = vrot.lane.b32.xlu0 %v373, 97
        %v397 = vpop.permute.xlu0 %396
        %vm398 = vcmask 793600
        %v399 = vsel %vm398, %v393, %v395
        %v400 = vsel %vm398, %v395, %v397
        %v403 = vsel %vm347, %v399, -inf
        %v404 = vsel %vm348, %v400, -inf
        %v405 = vmax.f32 %v390, %v403
        %v406 = vmax.f32 %v391, %v404
        %407 = vrot.lane.b32.xlu0 %v371, 95
        %v408 = vpop.permute.xlu0 %407
        %409 = vrot.lane.b32.xlu0 %v372, 95
        %v410 = vpop.permute.xlu0 %409
        %411 = vrot.lane.b32.xlu0 %v373, 95
        %v412 = vpop.permute.xlu0 %411
        %vm413 = vcmask 777216
        %v414 = vsel %vm413, %v408, %v410
        %v415 = vsel %vm413, %v410, %v412
        %v418 = vsel %vm349, %v414, -inf
        %v419 = vsel %vm350, %v415, -inf
        %v420 = vmax.f32 %v405, %v418
        %v421 = vmax.f32 %v406, %v419
        %422 = vrot.lane.b32.xlu0 %v371, 94
        %v423 = vpop.permute.xlu0 %422
        %424 = vrot.lane.b32.xlu0 %v372, 94
        %v425 = vpop.permute.xlu0 %424
        %426 = vrot.lane.b32.xlu0 %v373, 94
        %v427 = vpop.permute.xlu0 %426
        %vm428 = vcmask 769024
        %v429 = vsel %vm428, %v423, %v425
        %v430 = vsel %vm428, %v425, %v427
        %v433 = vsel %vm351, %v429, -inf
        %v434 = vsel %vm352, %v430, -inf
        %v435 = vmax.f32 %v420, %v433
        %v436 = vmax.f32 %v421, %v434
        %439 = vrot.lane.b32.xlu0 %v435, 32
        %v440 = vpop.permute.xlu0 %439
        %441 = vrot.lane.b32.xlu0 %v436, 32
        %v442 = vpop.permute.xlu0 %441
        %v443 = vsel %vm353, %v440, %v442
        %447 = vst.msk [vmem:[#allocation2] sm:$0xff] %vm367, %v440
        %448 = vst [vmem:[#allocation2 + $0x8] sm:$0xff] %v443
        %449 = vst.msk [vmem:[#allocation2 + $0x10] sm:$0xff] %vm353, %v442
        %v450 = vld [vmem:[#allocation2] sm:$0xff]
        %v451 = vld [vmem:[#allocation2 + $0x8] sm:$0xff]
        %v452 = vmax.f32 %v435, %v450
        %v453 = vmax.f32 %v436, %v451
        %v454 = vld [vmem:[#allocation2 + $0x10] sm:$0xff]
        %458 = vrot.lane.b32.xlu0 %v450, 112
        %v459 = vpop.permute.xlu0 %458
        %460 = vrot.lane.b32.xlu0 %v451, 112
        %v461 = vpop.permute.xlu0 %460
        %462 = vrot.lane.b32.xlu0 %v454, 112
        %v463 = vpop.permute.xlu0 %462
        %vm464 = vcmask 916480
        %v465 = vsel %vm464, %v459, %v461
        %v466 = vsel %vm464, %v461, %v463
        %v469 = vmax.f32 %v452, %v465
        %v470 = vmax.f32 %v453, %v466
        %471 = vrot.lane.b32.xlu0 %v450, 80
        %v472 = vpop.permute.xlu0 %471
        %473 = vrot.lane.b32.xlu0 %v451, 80
        %v474 = vpop.permute.xlu0 %473
        %475 = vrot.lane.b32.xlu0 %v454, 80
        %v476 = vpop.permute.xlu0 %475
        %vm477 = vcmask 654336
        %v478 = vsel %vm477, %v472, %v474
        %v479 = vsel %vm477, %v474, %v476
        %v482 = vmax.f32 %v469, %v478
        %v483 = vmax.f32 %v470, %v479
        %484 = vrot.lane.b32.xlu0 %v450, 64
        %v485 = vpop.permute.xlu0 %484
        %486 = vrot.lane.b32.xlu0 %v451, 64
        %v487 = vpop.permute.xlu0 %486
        %488 = vrot.lane.b32.xlu0 %v454, 64
        %v489 = vpop.permute.xlu0 %488
        %vm490 = vcmask 523264
        %v491 = vsel %vm490, %v485, %v487
        %v492 = vsel %vm490, %v487, %v489
        %v495 = vmax.f32 %v482, %v491
        %v496 = vmax.f32 %v483, %v492
        %499 = vrot.lane.b32.xlu0 %v495, 32
        %v500 = vpop.permute.xlu0 %499
        %501 = vrot.lane.b32.xlu0 %v496, 32
        %v502 = vpop.permute.xlu0 %501
        %v503 = vsel %vm353, %v500, %v502
        %507 = vst.msk [vmem:[#allocation2] sm:$0xff] %vm367, %v500
        %508 = vst [vmem:[#allocation2 + $0x8] sm:$0xff] %v503
        %509 = vst.msk [vmem:[#allocation2 + $0x10] sm:$0xff] %vm353, %v502
        %v510 = vld [vmem:[#allocation2] sm:$0xff]
        %v511 = vld [vmem:[#allocation2 + $0x8] sm:$0xff]
        %v512 = vld [vmem:[#allocation2 + $0x10] sm:$0xff]
        %516 = vrot.lane.b32.xlu0 %v510, 98
        %v517 = vpop.permute.xlu0 %516
        %518 = vrot.lane.b32.xlu0 %v511, 98
        %v519 = vpop.permute.xlu0 %518
        %520 = vrot.lane.b32.xlu0 %v512, 98
        %v521 = vpop.permute.xlu0 %520
        %v522 = vsel %vm383, %v517, %v519
        %v523 = vsel %vm383, %v519, %v521
        %v526 = vsel %vm345, %v522, -inf
        %v527 = vsel %vm346, %v523, -inf
        %v528 = vmax.f32 %v495, %v526
        %v529 = vmax.f32 %v496, %v527
        %530 = vrot.lane.b32.xlu0 %v510, 97
        %v531 = vpop.permute.xlu0 %530
        %532 = vrot.lane.b32.xlu0 %v511, 97
        %v533 = vpop.permute.xlu0 %532
        %534 = vrot.lane.b32.xlu0 %v512, 97
        %v535 = vpop.permute.xlu0 %534
        %v536 = vsel %vm398, %v531, %v533
        %v537 = vsel %vm398, %v533, %v535
        %v540 = vsel %vm347, %v536, -inf
        %v541 = vsel %vm348, %v537, -inf
        %v542 = vmax.f32 %v528, %v540
        %v543 = vmax.f32 %v529, %v541
        %544 = vrot.lane.b32.xlu0 %v510, 95
        %v545 = vpop.permute.xlu0 %544
        %546 = vrot.lane.b32.xlu0 %v511, 95
        %v547 = vpop.permute.xlu0 %546
        %548 = vrot.lane.b32.xlu0 %v512, 95
        %v549 = vpop.permute.xlu0 %548
        %v550 = vsel %vm413, %v545, %v547
        %v551 = vsel %vm413, %v547, %v549
        %v554 = vsel %vm349, %v550, -inf
        %v555 = vsel %vm350, %v551, -inf
        %v556 = vmax.f32 %v542, %v554
        %v557 = vmax.f32 %v543, %v555
        %558 = vrot.lane.b32.xlu0 %v510, 94
        %v559 = vpop.permute.xlu0 %558
        %560 = vrot.lane.b32.xlu0 %v511, 94
        %v561 = vpop.permute.xlu0 %560
        %562 = vrot.lane.b32.xlu0 %v512, 94
        %v563 = vpop.permute.xlu0 %562
        %v564 = vsel %vm428, %v559, %v561
        %v565 = vsel %vm428, %v561, %v563
        %v568 = vsel %vm351, %v564, -inf
        %v569 = vsel %vm352, %v565, -inf
        %v570 = vmax.f32 %v556, %v568
        %v571 = vmax.f32 %v557, %v569
        %574 = vrot.lane.b32.xlu0 %v570, 32
        %v575 = vpop.permute.xlu0 %574
        %576 = vrot.lane.b32.xlu0 %v571, 32
        %v577 = vpop.permute.xlu0 %576
        %v578 = vsel %vm353, %v575, %v577
        %582 = vst.msk [vmem:[#allocation2] sm:$0xff] %vm367, %v575
        %583 = vst [vmem:[#allocation2 + $0x8] sm:$0xff] %v578
        %584 = vst.msk [vmem:[#allocation2 + $0x10] sm:$0xff] %vm353, %v577
        %v585 = vld [vmem:[#allocation2] sm:$0xff]
        %v586 = vld [vmem:[#allocation2 + $0x8] sm:$0xff]
        %v587 = vmax.f32 %v570, %v585
        %v588 = vmax.f32 %v571, %v586
        %v589 = vld [vmem:[#allocation2 + $0x10] sm:$0xff]
        %593 = vrot.lane.b32.xlu0 %v585, 112
        %v594 = vpop.permute.xlu0 %593
        %595 = vrot.lane.b32.xlu0 %v586, 112
        %v596 = vpop.permute.xlu0 %595
        %597 = vrot.lane.b32.xlu0 %v589, 112
        %v598 = vpop.permute.xlu0 %597
        %v599 = vsel %vm464, %v594, %v596
        %v600 = vsel %vm464, %v596, %v598
        %v603 = vmax.f32 %v587, %v599
        %v604 = vmax.f32 %v588, %v600
        %605 = vrot.lane.b32.xlu0 %v585, 80
        %v606 = vpop.permute.xlu0 %605
        %607 = vrot.lane.b32.xlu0 %v586, 80
        %v608 = vpop.permute.xlu0 %607
        %609 = vrot.lane.b32.xlu0 %v589, 80
        %v610 = vpop.permute.xlu0 %609
        %v611 = vsel %vm477, %v606, %v608
        %v612 = vsel %vm477, %v608, %v610
        %v615 = vmax.f32 %v603, %v611
        %v616 = vmax.f32 %v604, %v612
        %617 = vrot.lane.b32.xlu0 %v585, 64
        %v618 = vpop.permute.xlu0 %617
        %619 = vrot.lane.b32.xlu0 %v586, 64
        %v620 = vpop.permute.xlu0 %619
        %621 = vrot.lane.b32.xlu0 %v589, 64
        %v622 = vpop.permute.xlu0 %621
        %v623 = vsel %vm490, %v618, %v620
        %v624 = vsel %vm490, %v620, %v622
        %v627 = vmax.f32 %v615, %v623
        %v628 = vmax.f32 %v616, %v624
        %631 = vrot.lane.b32.xlu0 %v627, 32
        %v632 = vpop.permute.xlu0 %631
        %633 = vrot.lane.b32.xlu0 %v628, 32
        %v634 = vpop.permute.xlu0 %633
        %v635 = vsel %vm353, %v632, %v634
        %639 = vst.msk [vmem:[#allocation2] sm:$0xff] %vm367, %v632
        %640 = vst [vmem:[#allocation2 + $0x8] sm:$0xff] %v635
        %641 = vst.msk [vmem:[#allocation2 + $0x10] sm:$0xff] %vm353, %v634
        %v642 = vld [vmem:[#allocation2] sm:$0xff]
        %v643 = vld [vmem:[#allocation2 + $0x8] sm:$0xff]
        %v644 = vld [vmem:[#allocation2 + $0x10] sm:$0xff]
        %648 = vrot.lane.b32.xlu0 %v642, 98
        %v649 = vpop.permute.xlu0 %648
        %650 = vrot.lane.b32.xlu0 %v643, 98
        %v651 = vpop.permute.xlu0 %650
        %652 = vrot.lane.b32.xlu0 %v644, 98
        %v653 = vpop.permute.xlu0 %652
        %v654 = vsel %vm383, %v649, %v651
        %v655 = vsel %vm383, %v651, %v653
        %v658 = vsel %vm345, %v654, -inf
        %v659 = vsel %vm346, %v655, -inf
        %v660 = vmax.f32 %v627, %v658
        %v661 = vmax.f32 %v628, %v659
        %662 = vrot.lane.b32.xlu0 %v642, 97
        %v663 = vpop.permute.xlu0 %662
        %664 = vrot.lane.b32.xlu0 %v643, 97
        %v665 = vpop.permute.xlu0 %664
        %666 = vrot.lane.b32.xlu0 %v644, 97
        %v667 = vpop.permute.xlu0 %666
        %v668 = vsel %vm398, %v663, %v665
        %v669 = vsel %vm398, %v665, %v667
        %v672 = vsel %vm347, %v668, -inf
        %v673 = vsel %vm348, %v669, -inf
        %v674 = vmax.f32 %v660, %v672
        %v675 = vmax.f32 %v661, %v673
        %676 = vrot.lane.b32.xlu0 %v642, 95
        %v677 = vpop.permute.xlu0 %676
        %678 = vrot.lane.b32.xlu0 %v643, 95
        %v679 = vpop.permute.xlu0 %678
        %680 = vrot.lane.b32.xlu0 %v644, 95
        %v681 = vpop.permute.xlu0 %680
        %v682 = vsel %vm413, %v677, %v679
        %v683 = vsel %vm413, %v679, %v681
        %v686 = vsel %vm349, %v682, -inf
        %v687 = vsel %vm350, %v683, -inf
        %v688 = vmax.f32 %v674, %v686
        %v689 = vmax.f32 %v675, %v687
        %690 = vrot.lane.b32.xlu0 %v642, 94
        %v691 = vpop.permute.xlu0 %690
        %692 = vrot.lane.b32.xlu0 %v643, 94
        %v693 = vpop.permute.xlu0 %692
        %694 = vrot.lane.b32.xlu0 %v644, 94
        %v695 = vpop.permute.xlu0 %694
        %v696 = vsel %vm428, %v691, %v693
        %v697 = vsel %vm428, %v693, %v695
        %v700 = vsel %vm351, %v696, -inf
        %v701 = vsel %vm352, %v697, -inf
        %v702 = vmax.f32 %v688, %v700
        %v703 = vmax.f32 %v689, %v701
        %706 = vrot.lane.b32.xlu0 %v702, 32
        %v707 = vpop.permute.xlu0 %706
        %708 = vrot.lane.b32.xlu0 %v703, 32
        %v709 = vpop.permute.xlu0 %708
        %v710 = vsel %vm353, %v707, %v709
        %714 = vst.msk [vmem:[#allocation2] sm:$0xff] %vm367, %v707
        %715 = vst [vmem:[#allocation2 + $0x8] sm:$0xff] %v710
        %716 = vst.msk [vmem:[#allocation2 + $0x10] sm:$0xff] %vm353, %v709
        %v717 = vld [vmem:[#allocation2] sm:$0xff]
        %v718 = vld [vmem:[#allocation2 + $0x8] sm:$0xff]
        %v719 = vmax.f32 %v702, %v717
        %v720 = vmax.f32 %v703, %v718
        %v721 = vld [vmem:[#allocation2 + $0x10] sm:$0xff]
        %725 = vrot.lane.b32.xlu0 %v717, 112
        %v726 = vpop.permute.xlu0 %725
        %727 = vrot.lane.b32.xlu0 %v718, 112
        %v728 = vpop.permute.xlu0 %727
        %729 = vrot.lane.b32.xlu0 %v721, 112
        %v730 = vpop.permute.xlu0 %729
        %v731 = vsel %vm464, %v726, %v728
        %v732 = vsel %vm464, %v728, %v730
        %v735 = vmax.f32 %v719, %v731
        %v736 = vmax.f32 %v720, %v732
        %737 = vrot.lane.b32.xlu0 %v717, 80
        %v738 = vpop.permute.xlu0 %737
        %739 = vrot.lane.b32.xlu0 %v718, 80
        %v740 = vpop.permute.xlu0 %739
        %741 = vrot.lane.b32.xlu0 %v721, 80
        %v742 = vpop.permute.xlu0 %741
        %v743 = vsel %vm477, %v738, %v740
        %v744 = vsel %vm477, %v740, %v742
        %v747 = vmax.f32 %v735, %v743
        %v748 = vmax.f32 %v736, %v744
        %749 = vrot.lane.b32.xlu0 %v717, 64
        %v750 = vpop.permute.xlu0 %749
        %751 = vrot.lane.b32.xlu0 %v718, 64
        %v752 = vpop.permute.xlu0 %751
        %753 = vrot.lane.b32.xlu0 %v721, 64
        %v754 = vpop.permute.xlu0 %753
        %v755 = vsel %vm490, %v750, %v752
        %v756 = vsel %vm490, %v752, %v754
        %v759 = vmax.f32 %v747, %v755
        %v760 = vmax.f32 %v748, %v756
        %v761 = vld [vmem:[%s3] sm:$0xff]
        %v762 = vld [vmem:[%s3 + $0x8] sm:$0xff]
        %s763 = scalar_lea.vmem %s3, 16
        %v764 = vld [vmem:[%s763] sm:$0xff]
        %v765 = vld [vmem:[%s763 + $0x8] sm:$0xff]
        %vm766 = vcmask 64512
        %v768 = vsel %vm766, %v764, 0
        %v771 = vsel %vm766, %v765, 0
        %773 = vmatpush.msra.mxu0 0.0
        %774 = vmatpush.msra.mxu0 0.0
        %775 = vmatpush.msra.mxu0 0.0
        %776 = vmatpush.msra.mxu0 0.0
        %777 = vmatpush.msra.mxu0 0.0
        %778 = vmatpush.msra.mxu0 0.0
        %779 = vmatpush.msra.mxu0 0.0
        %780 = vmatpush.msra.mxu0 0.0
        %781 = vmatpush.msra.mxu0 0.0
        %782 = vmatpush.msra.mxu0 0.0
        %783 = vmatpush.msra.mxu0 0.0
        %784 = vmatpush.msra.mxu0 0.0
        %785 = vmatpush.msra.mxu0 0.0
        %786 = vmatpush.msra.mxu0 0.0
        %787 = vmatpush.msra.mxu0 0.0
        %788 = vmatpush.msra.mxu0 %v495
        %789 = vmatmul.f32.gmra.mxu0 %v768
        %v790 = vpop.f32.mrf.mxu0
        %v791 = vadd.f32 0.0, %v790
        %792 = vmatmul.f32.gmra.mxu0 %v771
        %v793 = vpop.f32.mrf.mxu0
        %v794 = vadd.f32 0.0, %v793
        %795 = vdwg.mxu0
        %796 = vmatpush.msra.mxu0 0.0
        %797 = vmatpush.msra.mxu0 0.0
        %798 = vmatpush.msra.mxu0 0.0
        %799 = vmatpush.msra.mxu0 0.0
        %800 = vmatpush.msra.mxu0 0.0
        %801 = vmatpush.msra.mxu0 0.0
        %802 = vmatpush.msra.mxu0 0.0
        %803 = vmatpush.msra.mxu0 0.0
        %804 = vmatpush.msra.mxu0 0.0
        %805 = vmatpush.msra.mxu0 0.0
        %806 = vmatpush.msra.mxu0 0.0
        %807 = vmatpush.msra.mxu0 0.0
        %808 = vmatpush.msra.mxu0 0.0
        %809 = vmatpush.msra.mxu0 0.0
        %810 = vmatpush.msra.mxu0 0.0
        %811 = vmatpush.msra.mxu0 %v496
        %812 = vmatmul.f32.gmra.mxu0 %v768
        %v813 = vpop.f32.mrf.mxu0
        %v814 = vadd.f32 0.0, %v813
        %815 = vmatmul.f32.gmra.mxu0 %v771
        %v816 = vpop.f32.mrf.mxu0
        %v817 = vadd.f32 0.0, %v816
        %818 = vdwg.mxu0
        %v820 = vsel %vm766, %v761, 0
        %v823 = vsel %vm766, %v762, 0
        %825 = vmatpush.msra.mxu0 0.0
        %826 = vmatpush.msra.mxu0 0.0
        %827 = vmatpush.msra.mxu0 0.0
        %828 = vmatpush.msra.mxu0 0.0
        %829 = vmatpush.msra.mxu0 0.0
        %830 = vmatpush.msra.mxu0 0.0
        %831 = vmatpush.msra.mxu0 0.0
        %832 = vmatpush.msra.mxu0 0.0
        %833 = vmatpush.msra.mxu0 0.0
        %834 = vmatpush.msra.mxu0 0.0
        %835 = vmatpush.msra.mxu0 0.0
        %836 = vmatpush.msra.mxu0 0.0
        %837 = vmatpush.msra.mxu0 0.0
        %838 = vmatpush.msra.mxu0 0.0
        %839 = vmatpush.msra.mxu0 0.0
        %840 = vmatpush.msra.mxu0 %v316
        %841 = vmatmul.f32.gmra.mxu0 %v820
        %v842 = vpop.f32.mrf.mxu0
        %v843 = vadd.f32 %v791, %v842
        %844 = vmatmul.f32.gmra.mxu0 %v823
        %v845 = vpop.f32.mrf.mxu0
        %v846 = vadd.f32 %v794, %v845
        %847 = vdwg.mxu0
        %848 = vmatpush.msra.mxu0 0.0
        %849 = vmatpush.msra.mxu0 0.0
        %850 = vmatpush.msra.mxu0 0.0
        %851 = vmatpush.msra.mxu0 0.0
        %852 = vmatpush.msra.mxu0 0.0
        %853 = vmatpush.msra.mxu0 0.0
        %854 = vmatpush.msra.mxu0 0.0
        %855 = vmatpush.msra.mxu0 0.0
        %856 = vmatpush.msra.mxu0 0.0
        %857 = vmatpush.msra.mxu0 0.0
        %858 = vmatpush.msra.mxu0 0.0
        %859 = vmatpush.msra.mxu0 0.0
        %860 = vmatpush.msra.mxu0 0.0
        %861 = vmatpush.msra.mxu0 0.0
        %862 = vmatpush.msra.mxu0 0.0
        %863 = vmatpush.msra.mxu0 %v317
        %864 = vmatmul.f32.gmra.mxu0 %v820
        %v865 = vpop.f32.mrf.mxu0
        %v866 = vadd.f32 %v814, %v865
        %867 = vmatmul.f32.gmra.mxu0 %v823
        %v868 = vpop.f32.mrf.mxu0
        %v869 = vadd.f32 %v817, %v868
        %870 = vdwg.mxu0
        %s871 = scalar_lea.vmem %s3, 32
        %v872 = vld [vmem:[%s871] sm:$0xff]
        %v873 = vld [vmem:[%s871 + $0x8] sm:$0xff]
        %v875 = vsel %vm766, %v872, 0
        %v878 = vsel %vm766, %v873, 0
        %880 = vmatpush.msra.mxu0 0.0
        %881 = vmatpush.msra.mxu0 0.0
        %882 = vmatpush.msra.mxu0 0.0
        %883 = vmatpush.msra.mxu0 0.0
        %884 = vmatpush.msra.mxu0 0.0
        %885 = vmatpush.msra.mxu0 0.0
        %886 = vmatpush.msra.mxu0 0.0
        %887 = vmatpush.msra.mxu0 0.0
        %888 = vmatpush.msra.mxu0 0.0
        %889 = vmatpush.msra.mxu0 0.0
        %890 = vmatpush.msra.mxu0 0.0
        %891 = vmatpush.msra.mxu0 0.0
        %892 = vmatpush.msra.mxu0 0.0
        %893 = vmatpush.msra.mxu0 0.0
        %894 = vmatpush.msra.mxu0 0.0
        %895 = vmatpush.msra.mxu0 %v627
        %896 = vmatmul.f32.gmra.mxu0 %v875
        %v897 = vpop.f32.mrf.mxu0
        %v898 = vadd.f32 0.0, %v897
        %899 = vmatmul.f32.gmra.mxu0 %v878
        %v900 = vpop.f32.mrf.mxu0
        %v901 = vadd.f32 0.0, %v900
        %902 = vdwg.mxu0
        %903 = vmatpush.msra.mxu0 0.0
        %904 = vmatpush.msra.mxu0 0.0
        %905 = vmatpush.msra.mxu0 0.0
        %906 = vmatpush.msra.mxu0 0.0
        %907 = vmatpush.msra.mxu0 0.0
        %908 = vmatpush.msra.mxu0 0.0
        %909 = vmatpush.msra.mxu0 0.0
        %910 = vmatpush.msra.mxu0 0.0
        %911 = vmatpush.msra.mxu0 0.0
        %912 = vmatpush.msra.mxu0 0.0
        %913 = vmatpush.msra.mxu0 0.0
        %914 = vmatpush.msra.mxu0 0.0
        %915 = vmatpush.msra.mxu0 0.0
        %916 = vmatpush.msra.mxu0 0.0
        %917 = vmatpush.msra.mxu0 0.0
        %918 = vmatpush.msra.mxu0 %v628
        %919 = vmatmul.f32.gmra.mxu0 %v875
        %v920 = vpop.f32.mrf.mxu0
        %v921 = vadd.f32 0.0, %v920
        %922 = vmatmul.f32.gmra.mxu0 %v878
        %v923 = vpop.f32.mrf.mxu0
        %v924 = vadd.f32 0.0, %v923
        %925 = vdwg.mxu0
        %v926 = vadd.f32 %v843, %v898
        %v927 = vadd.f32 %v866, %v921
        %v928 = vadd.f32 %v846, %v901
        %v929 = vadd.f32 %v869, %v924
        %s930 = scalar_lea.vmem %s3, 48
        %v931 = vld [vmem:[%s930] sm:$0xff]
        %v932 = vld [vmem:[%s930 + $0x8] sm:$0xff]
        %v934 = vsel %vm766, %v931, 0
        %v937 = vsel %vm766, %v932, 0
        %939 = vmatpush.msra.mxu0 0.0
        %940 = vmatpush.msra.mxu0 0.0
        %941 = vmatpush.msra.mxu0 0.0
        %942 = vmatpush.msra.mxu0 0.0
        %943 = vmatpush.msra.mxu0 0.0
        %944 = vmatpush.msra.mxu0 0.0
        %945 = vmatpush.msra.mxu0 0.0
        %946 = vmatpush.msra.mxu0 0.0
        %947 = vmatpush.msra.mxu0 0.0
        %948 = vmatpush.msra.mxu0 0.0
        %949 = vmatpush.msra.mxu0 0.0
        %950 = vmatpush.msra.mxu0 0.0
        %951 = vmatpush.msra.mxu0 0.0
        %952 = vmatpush.msra.mxu0 0.0
        %953 = vmatpush.msra.mxu0 0.0
        %954 = vmatpush.msra.mxu0 %v759
        %955 = vmatmul.f32.gmra.mxu0 %v934
        %v956 = vpop.f32.mrf.mxu0
        %v957 = vadd.f32 0.0, %v956
        %958 = vmatmul.f32.gmra.mxu0 %v937
        %v959 = vpop.f32.mrf.mxu0
        %v960 = vadd.f32 0.0, %v959
        %961 = vdwg.mxu0
        %962 = vmatpush.msra.mxu0 0.0
        %963 = vmatpush.msra.mxu0 0.0
        %964 = vmatpush.msra.mxu0 0.0
        %965 = vmatpush.msra.mxu0 0.0
        %966 = vmatpush.msra.mxu0 0.0
        %967 = vmatpush.msra.mxu0 0.0
        %968 = vmatpush.msra.mxu0 0.0
        %969 = vmatpush.msra.mxu0 0.0
        %970 = vmatpush.msra.mxu0 0.0
        %971 = vmatpush.msra.mxu0 0.0
        %972 = vmatpush.msra.mxu0 0.0
        %973 = vmatpush.msra.mxu0 0.0
        %974 = vmatpush.msra.mxu0 0.0
        %975 = vmatpush.msra.mxu0 0.0
        %976 = vmatpush.msra.mxu0 0.0
        %977 = vmatpush.msra.mxu0 %v760
        %978 = vmatmul.f32.gmra.mxu0 %v934
        %v979 = vpop.f32.mrf.mxu0
        %v980 = vadd.f32 0.0, %v979
        %981 = vmatmul.f32.gmra.mxu0 %v937
        %v982 = vpop.f32.mrf.mxu0
        %v983 = vadd.f32 0.0, %v982
        %984 = vdwg.mxu0
        %v985 = vadd.f32 %v926, %v957
        %v986 = vadd.f32 %v927, %v980
        %v987 = vadd.f32 %v928, %v960
        %v988 = vadd.f32 %v929, %v983
        %v989 = vld [vmem:[%s4] sm:$0xff]
        %v990 = vld [vmem:[%s4 + $0x8] sm:$0xff]
        %992 = vset.pattern.permute.xlu0 0
        %993 = vperm.xlu0 %992, %v989
        %v994 = vpop.permute.xlu0 %993
        %997 = vset.pattern.permute.xlu0 0
        %998 = vperm.xlu0 %997, %v990
        %v999 = vpop.permute.xlu0 %998
        %v1001 = vadd.f32 %v985, %v994
        %v1002 = vadd.f32 %v986, %v994
        %v1003 = vadd.f32 %v987, %v999
        %v1004 = vadd.f32 %v988, %v999
        %v1005 = vsub.f32 0.0, %v1001
        %v1006 = vsub.f32 0.0, %v1002
        %v1007 = vsub.f32 0.0, %v1003
        %v1008 = vsub.f32 0.0, %v1004
        %v1009 = vmul.f32 %v1005, 1.442695
        %v1010 = vpow.pop %v1009
        %v1011 = vmul.f32 %v1006, 1.442695
        %v1012 = vpow.pop %v1011
        %v1013 = vmul.f32 %v1007, 1.442695
        %v1014 = vpow.pop %v1013
        %v1015 = vmul.f32 %v1008, 1.442695
        %v1016 = vpow.pop %v1015
        %v1017 = vadd.f32 %v1010, 1.0
        %v1018 = vadd.f32 %v1012, 1.0
        %v1019 = vadd.f32 %v1014, 1.0
        %v1020 = vadd.f32 %v1016, 1.0
        %v1021 = vrcp.pop %v1017
        %v1022 = vmul.f32 %v1017, %v1021
        %v1023 = vsub.f32 1.0, %v1022
        %v1024 = vmul.f32 %v1021, %v1023
        %v1025 = vadd.f32 %v1021, %v1024
        %vm1026 = vweird.f32 %v1017
        %vm1027 = vweird.f32 %v1021
        %vm1028 = vmor %vm1026, %vm1027
        %v1029 = vsel %vm1028, %v1021, %v1025
        %v1030 = vand.u32 2147483647, %v1017
        %vm1031 = vcmp.eq.f32.partialorder %v1030, 8.507059e+37
        %v1032 = vand.u32 %v1017, 2147483648
        %v1033 = vor.u32 1.1754944e-38, %v1032
        %v1034 = vsel %vm1031, %v1033, %v1029
        %v1035 = vmul.f32 1.0, %v1034
        %v1036 = vrcp.pop %v1018
        %v1037 = vmul.f32 %v1018, %v1036
        %v1038 = vsub.f32 1.0, %v1037
        %v1039 = vmul.f32 %v1036, %v1038
        %v1040 = vadd.f32 %v1036, %v1039
        %vm1041 = vweird.f32 %v1018
        %vm1042 = vweird.f32 %v1036
        %vm1043 = vmor %vm1041, %vm1042
        %v1044 = vsel %vm1043, %v1036, %v1040
        %v1045 = vand.u32 2147483647, %v1018
        %vm1046 = vcmp.eq.f32.partialorder %v1045, 8.507059e+37
        %v1047 = vand.u32 %v1018, 2147483648
        %v1048 = vor.u32 1.1754944e-38, %v1047
        %v1049 = vsel %vm1046, %v1048, %v1044
        %v1050 = vmul.f32 1.0, %v1049
        %v1051 = vrcp.pop %v1019
        %v1052 = vmul.f32 %v1019, %v1051
        %v1053 = vsub.f32 1.0, %v1052
        %v1054 = vmul.f32 %v1051, %v1053
        %v1055 = vadd.f32 %v1051, %v1054
        %vm1056 = vweird.f32 %v1019
        %vm1057 = vweird.f32 %v1051
        %vm1058 = vmor %vm1056, %vm1057
        %v1059 = vsel %vm1058, %v1051, %v1055
        %v1060 = vand.u32 2147483647, %v1019
        %vm1061 = vcmp.eq.f32.partialorder %v1060, 8.507059e+37
        %v1062 = vand.u32 %v1019, 2147483648
        %v1063 = vor.u32 1.1754944e-38, %v1062
        %v1064 = vsel %vm1061, %v1063, %v1059
        %v1065 = vmul.f32 1.0, %v1064
        %v1066 = vrcp.pop %v1020
        %v1067 = vmul.f32 %v1020, %v1066
        %v1068 = vsub.f32 1.0, %v1067
        %v1069 = vmul.f32 %v1066, %v1068
        %v1070 = vadd.f32 %v1066, %v1069
        %vm1071 = vweird.f32 %v1020
        %vm1072 = vweird.f32 %v1066
        %vm1073 = vmor %vm1071, %vm1072
        %v1074 = vsel %vm1073, %v1066, %v1070
        %v1075 = vand.u32 2147483647, %v1020
        %vm1076 = vcmp.eq.f32.partialorder %v1075, 8.507059e+37
        %v1077 = vand.u32 %v1020, 2147483648
        %v1078 = vor.u32 1.1754944e-38, %v1077
        %v1079 = vsel %vm1076, %v1078, %v1074
        %v1080 = vmul.f32 1.0, %v1079
        %v1081 = vmul.f32 %v1001, %v1035
        %v1082 = vmul.f32 %v1002, %v1050
        %v1083 = vmul.f32 %v1003, %v1065
        %v1084 = vmul.f32 %v1004, %v1080
        %1085 = vst [vmem:[%s217] sm:$0xff] %v1081
        %1086 = vst [vmem:[%s217 + $0x8] sm:$0xff] %v1082
        %1087 = vst [vmem:[%s217 + $0x10] sm:$0xff] %v1083
        %1088 = vst [vmem:[%s217 + $0x18] sm:$0xff] %v1084
        %s1089 = sand.u32 %s137, 1
        %s1090 = scalar_lea.sflag [#allocation4], %s1089
        %s1091 = sand.u32 %s137, 1
        %s1092 = smul.addr %s1091, 32
        %s1093 = scalar_lea.vmem [#allocation3], %s1092
        // Predicated region
        $region41: #{tpu_custom_call.1} parent=39 // pred_check
          %p1094 = pneg %p147
        $region42: #{tpu_custom_call.1} parent=39 // pred_check_branch
          %1096 = sbr.rel (%p1094) target = $region44
        $region43: #{tpu_custom_call.1} parent=39 // pred_region
          %1098 = vsyncadd %s1090, 0
          %s1099 = smul.addr %s19, 4
          %s1100 = smul.addr %s1099, 8
          %s1101 = scalar_lea.hbm %s5, %s1100
          %s1102 = sshll.u32 %s1093, 4
          %s1103 = int_to_ptr.vmem [resolvable:$true] %s1102
          %s1104 = sshll.u32 %s1101, 4
          %s1105 = int_to_ptr.hbm [resolvable:$true] %s1104
          %1110 = dma.vmem_to_hbm [thread:$0]  %s1103, 512, %s1105, %s1090, 256, 256, 16
        $region44: #{tpu_custom_call.1} parent=39 // pred_fallthru
          _
      $region40: #{tpu_custom_call.1} parent=5 // pred_fallthru
        _
      %p1111 = scmp.le.s32.totalorder 2, %s14
      // Predicated region
      $region45: #{tpu_custom_call.1} parent=5 // pred_check
        %p1112 = pneg %p1111
      $region46: #{tpu_custom_call.1} parent=5 // pred_check_branch
        %1114 = sbr.rel (%p1112) target = $region48
      $region47: #{tpu_custom_call.1} parent=5 // pred_region
        %s1115 = ssub.s32 %s14, 2
        // Predicated region
        $region49: #{tpu_custom_call.1} parent=47 // pred_check
          %p1116 = pneg %p153
        $region50: #{tpu_custom_call.1} parent=47 // pred_check_branch
          %1118 = sbr.rel (%p1116) target = $region52
        $region51: #{tpu_custom_call.1} parent=47 // pred_region
          %s1119 = sand.u32 %s138, 1
          %s1120 = scalar_lea.sflag [#allocation4], %s1119
          %s1121 = sand.u32 %s138, 1
          %s1122 = smul.addr %s1121, 32
          %s1123 = scalar_lea.vmem [#allocation3], %s1122
          %1125 = dma.done %s1120, 512
        $region52: #{tpu_custom_call.1} parent=47 // pred_fallthru
          _
      $region48: #{tpu_custom_call.1} parent=5 // pred_fallthru
        _
    $region6: #{tpu_custom_call.1} parent=1 // loop_footer
      %s18 = sadd.s32 1, %s14
    $region7: #{tpu_custom_call.1} parent=1 // loop_footer_branch
      %13 = sbr.rel target = $region3
    $region8: #{tpu_custom_call.1} parent=1 // loop_exit
      _
    %1126 = vsyncpa [#allocation4], 1
    %s1127 = scalar_lea.sflag [#allocation4], 1
    %1128 = vsyncpa %s1127, 1

</llo_original>
